<compile_context>
chip_gen: v5e
topology: v5e:2x2
jax: 0.10.0
libtpu: 0.0.40
codegen_flags: <defaults>
</compile_context>

<pallas_src>
import math

import jax
import jax.numpy as jnp
from jax import lax
from jax.experimental import pallas as pl
from jax.experimental.pallas import tpu as pltpu


def _round_up(x, m):
    return ((x + m - 1) // m) * m


# ----------------------------- MLM head kernel ------------------------------
def _mlm_kernel(x_ref, w1_ref, b1_ref, g_ref, beta_ref, w2_ref, b2_ref, o_ref, h_ref):
    # x_ref   : (TM, D)   bf16  row tile of flattened tokens
    # w1_ref  : (D, D)    bf16  dense weight [in, out] (block index constant -> resident)
    # b1_ref  : (1, D)    f32
    # g_ref   : (1, D)    f32   LayerNorm gamma
    # beta_ref: (1, D)    f32   LayerNorm beta
    # w2_ref  : (D, TN)   bf16  decoder weight vocab tile [in, out_tile]
    # b2_ref  : (1, TN)   f32
    # o_ref   : (TM, TN)  f32   logits tile
    # h_ref   : (TM, D)   bf16  VMEM scratch: normalized hidden, reused over vocab tiles
    j = pl.program_id(1)

    # Dense -> GELU -> LayerNorm computed once per row tile; the vocab axis is the
    # inner, sequential ("arbitrary") grid axis, so h_ref stays valid across j.
    @pl.when(j == 0)
    def _():
        # MXU matmul in bf16 with f32 accumulation.
        h = jnp.dot(x_ref[...], w1_ref[...], preferred_element_type=jnp.float32)
        h = h + b1_ref[...]

        # Exact (erf-based) GELU, matching torch.nn.functional.gelu default (f32 math).
        h = 0.5 * h * (1.0 + lax.erf(h * (1.0 / math.sqrt(2.0))))

        # LayerNorm over the feature dim (biased variance, eps=1e-5, like nn.LayerNorm).
        mean = jnp.mean(h, axis=-1, keepdims=True)
        centered = h - mean
        var = jnp.mean(centered * centered, axis=-1, keepdims=True)
        inv = lax.rsqrt(var + 1e-5)
        h = centered * inv * g_ref[...] + beta_ref[...]

        h_ref[...] = h.astype(h_ref.dtype)

    # Decoder matmul for this vocab tile (bf16 x bf16 -> f32 accumulation).
    o_ref[...] = (
        jnp.dot(h_ref[...], w2_ref[...], preferred_element_type=jnp.float32)
        + b2_ref[...]
    ).astype(o_ref.dtype)


def mlm_head_pallas(x_flat, w1, b1, gamma, beta, w2, b2, *, tm=256, tn=1024):
    # x_flat: [N, D] f32, w1: [D, D], w2: [D, V]  (Linear weights stored as [in, out])
    N, D = x_flat.shape
    V = w2.shape[1]
    out_dtype = x_flat.dtype

    # Clamp tiles to the (padded) problem with TPU-friendly alignment:
    # row tile multiple of 8 (sublanes), vocab tile multiple of 128 (lanes).
    # Defaults (tm=256, tn=1024, bf16 weights) use ~12 MiB of VMEM at D=1024,
    # which fits every generation's scoped VMEM including v7x's 64 MiB part.
    tm = min(tm, _round_up(N, 8))
    tn = min(tn, _round_up(V, 128))
    n_pad = _round_up(N, tm)
    v_pad = _round_up(V, tn)

    # bf16 matmul operands (cast once at the boundary); biases / LN params stay f32.
    x_p = x_flat.astype(jnp.bfloat16)
    if n_pad != N:
        x_p = jnp.pad(x_p, ((0, n_pad - N), (0, 0)))
    w1_b = w1.astype(jnp.bfloat16)
    w2_b = w2.astype(jnp.bfloat16)
    b2_p = b2
    if v_pad != V:
        w2_b = jnp.pad(w2_b, ((0, 0), (0, v_pad - V)))
        b2_p = jnp.pad(b2, ((0, 0), (0, v_pad - V)))

    grid = (n_pad // tm, v_pad // tn)

    flops = 2 * n_pad * D * D + 2 * n_pad * D * v_pad
    bytes_accessed = (
        x_p.size * 2
        + w1_b.size * 2
        + w2_b.size * 2
        + (b1.size + gamma.size + beta.size + b2_p.size) * 4
        + n_pad * v_pad * 4
    )

    out = pl.pallas_call(
        _mlm_kernel,
        out_shape=jax.ShapeDtypeStruct((n_pad, v_pad), out_dtype),
        grid_spec=pltpu.PrefetchScalarGridSpec(
            num_scalar_prefetch=0,
            grid=grid,
            in_specs=[
                pl.BlockSpec((tm, D), lambda i, j: (i, 0)),   # x row tile
                pl.BlockSpec((D, D), lambda i, j: (0, 0)),    # w1 (constant block -> no re-DMA)
                pl.BlockSpec((1, D), lambda i, j: (0, 0)),    # b1
                pl.BlockSpec((1, D), lambda i, j: (0, 0)),    # gamma
                pl.BlockSpec((1, D), lambda i, j: (0, 0)),    # beta
                pl.BlockSpec((D, tn), lambda i, j: (0, j)),   # w2 vocab tile
                pl.BlockSpec((1, tn), lambda i, j: (0, j)),   # b2 vocab tile
            ],
            out_specs=pl.BlockSpec((tm, tn), lambda i, j: (i, j)),
            scratch_shapes=[pltpu.VMEM((tm, D), jnp.bfloat16)],  # per-row-tile hidden
        ),
        compiler_params=pltpu.CompilerParams(
            # Rows are independent -> shard across TensorCores; vocab axis is the
            # sequential axis that reuses the per-row h scratch.
            dimension_semantics=("parallel", "arbitrary"),
            vmem_limit_bytes=48 * 1024 * 1024,
        ),
        cost_estimate=pl.CostEstimate(
            flops=flops,
            transcendentals=n_pad * D,
            bytes_accessed=bytes_accessed,
        ),
    )(x_p, w1_b, b1, gamma, beta, w2_b, b2_p)

    return out[:N, :V]


# ----------------------------- NSP head kernel ------------------------------
def _nsp_kernel(p_ref, wc_ref, bc_ref, o_ref):
    # p_ref : (Bp, D), wc_ref : (D, Cp), bc_ref : (1, Cp), o_ref : (Bp, Cp)
    o_ref[...] = (
        jnp.dot(p_ref[...], wc_ref[...], preferred_element_type=jnp.float32)
        + bc_ref[...]
    ).astype(o_ref.dtype)


def nsp_head_pallas(pooled, wc, bc):
    # Tiny (B, D) x (D, 2) matmul. Lane-pad the 2-class output to 128 columns so
    # the store path is unmasked (full-lane vst), then slice back outside.
    B, D = pooled.shape
    C = wc.shape[1]
    b_pad = _round_up(B, 8)
    c_pad = _round_up(C, 128)

    p = pooled if b_pad == B else jnp.pad(pooled, ((0, b_pad - B), (0, 0)))
    wc_p = wc if c_pad == C else jnp.pad(wc, ((0, 0), (0, c_pad - C)))
    bc_p = bc if c_pad == C else jnp.pad(bc, ((0, 0), (0, c_pad - C)))

    out = pl.pallas_call(
        _nsp_kernel,
        out_shape=jax.ShapeDtypeStruct((b_pad, c_pad), pooled.dtype),
        in_specs=[
            pl.BlockSpec((b_pad, D), lambda: (0, 0)),
            pl.BlockSpec((D, c_pad), lambda: (0, 0)),
            pl.BlockSpec((1, c_pad), lambda: (0, 0)),
        ],
        out_specs=pl.BlockSpec((b_pad, c_pad), lambda: (0, 0)),
    )(p, wc_p, bc_p)
    return out[:B, :C]


# ------------------------------- full module --------------------------------
def bert_pretraining_heads(params, sequence_output, pooled_output):
    B, S, D = sequence_output.shape
    x_flat = sequence_output.reshape(B * S, D)
    mlm_flat = mlm_head_pallas(
        x_flat,
        params["mlm_dense_w"], params["mlm_dense_b"],
        params["mlm_ln_g"], params["mlm_ln_b"],
        params["mlm_dec_w"], params["mlm_dec_b"],
    )
    mlm_logits = mlm_flat.reshape(B, S, -1)
    nsp_logits = nsp_head_pallas(pooled_output, params["nsp_w"], params["nsp_b"])
    return mlm_logits, nsp_logits


# ------------------------------ JAX reference --------------------------------
def bert_pretraining_heads_ref(params, sequence_output, pooled_output):
    h = sequence_output @ params["mlm_dense_w"] + params["mlm_dense_b"][0]
    h = 0.5 * h * (1.0 + lax.erf(h / jnp.sqrt(2.0)))
    mean = jnp.mean(h, axis=-1, keepdims=True)
    var = jnp.mean((h - mean) ** 2, axis=-1, keepdims=True)
    h = (h - mean) * lax.rsqrt(var + 1e-5) * params["mlm_ln_g"][0] + params["mlm_ln_b"][0]
    mlm = h @ params["mlm_dec_w"] + params["mlm_dec_b"][0]
    nsp = pooled_output @ params["nsp_w"] + params["nsp_b"][0]
    return mlm, nsp


if __name__ == "__main__":
    # Small shapes consistent with the module.
    B, S, D, V = 2, 16, 128, 256
    key = jax.random.PRNGKey(0)
    keys = jax.random.split(key, 10)

    # Deterministic synthetic parameters (Linear weights stored as [in, out]).
    scale = 0.02
    params = {
        "mlm_dense_w": scale * jax.random.normal(keys[0], (D, D), jnp.float32),
        "mlm_dense_b": scale * jax.random.normal(keys[1], (1, D), jnp.float32),
        "mlm_ln_g": 1.0 + scale * jax.random.normal(keys[2], (1, D), jnp.float32),
        "mlm_ln_b": scale * jax.random.normal(keys[3], (1, D), jnp.float32),
        "mlm_dec_w": scale * jax.random.normal(keys[4], (D, V), jnp.float32),
        "mlm_dec_b": scale * jax.random.normal(keys[5], (1, V), jnp.float32),
        "nsp_w": scale * jax.random.normal(keys[6], (D, 2), jnp.float32),
        "nsp_b": scale * jax.random.normal(keys[7], (1, 2), jnp.float32),
    }

    sequence_output = jax.random.normal(keys[8], (B, S, D), jnp.float32)
    pooled_output = jax.random.normal(keys[9], (B, D), jnp.float32)

    mlm_logits, nsp_logits = jax.jit(bert_pretraining_heads)(
        params, sequence_output, pooled_output
    )
    jax.block_until_ready((mlm_logits, nsp_logits))

    mlm_ref, nsp_ref = bert_pretraining_heads_ref(params, sequence_output, pooled_output)
    assert mlm_logits.shape == (B, S, V)
    assert nsp_logits.shape == (B, 2)
    # bf16 matmul operands with f32 accumulation -> allow a small tolerance.
    assert jnp.allclose(mlm_logits, mlm_ref, atol=2e-2, rtol=2e-2)
    assert jnp.allclose(nsp_logits, nsp_ref, atol=2e-2, rtol=2e-2)

    print("KERNEL_OK")
</pallas_src>

<mosaic_0001>
module attributes {stable_mosaic.version = 11 : i64} {
  func.func @_nsp_kernel(%arg0: memref<8x128xf32, #tpu.memory_space<vmem>>, %arg1: memref<128x128xf32, #tpu.memory_space<vmem>>, %arg2: memref<1x128xf32, #tpu.memory_space<vmem>>, %arg3: memref<8x128xf32, #tpu.memory_space<vmem>>) attributes {dimension_semantics = [], scalar_prefetch = 0 : i64, scratch_operands = 0 : i64, tpu.core_type = #tpu.core_type<tc>} {
    %c0 = arith.constant 0 : index
    %c0_0 = arith.constant 0 : index
    %0 = vector.load %arg0[%c0, %c0_0] : memref<8x128xf32, #tpu.memory_space<vmem>>, vector<8x128xf32>
    %c0_1 = arith.constant 0 : index
    %c0_2 = arith.constant 0 : index
    %1 = vector.load %arg1[%c0_1, %c0_2] : memref<128x128xf32, #tpu.memory_space<vmem>>, vector<128x128xf32>
    %cst = arith.constant dense<0.000000e+00> : vector<8x128xf32>
    %2 = tpu.matmul %0, %1, %cst {dimension_numbers = #tpu.dot_dimension_numbers<[1], [0], [0], [1], [0, 0, 1, 1], [], []>} : vector<8x128xf32>, vector<128x128xf32>, vector<8x128xf32> -> vector<8x128xf32>
    %c0_3 = arith.constant 0 : index
    %c0_4 = arith.constant 0 : index
    %3 = vector.load %arg2[%c0_3, %c0_4] : memref<1x128xf32, #tpu.memory_space<vmem>>, vector<1x128xf32>
    %4 = vector.broadcast %3 : vector<1x128xf32> to vector<8x128xf32>
    %5 = arith.addf %2, %4 : vector<8x128xf32>
    %c0_5 = arith.constant 0 : index
    %c0_6 = arith.constant 0 : index
    %6 = vector.load %arg3[%c0_5, %c0_6] : memref<8x128xf32, #tpu.memory_space<vmem>>, vector<8x128xf32>
    tpu.vector_store %arg3[%c0_5, %c0_6], %5 {strides = array<i32>} : memref<8x128xf32, #tpu.memory_space<vmem>>, vector<8x128xf32>,
    return
  }
}

module attributes {stable_mosaic.version = 11 : i64} {
  func.func @_mlm_kernel(%arg0: i32, %arg1: i32, %arg2: memref<32x128xbf16, #tpu.memory_space<vmem>>, %arg3: memref<128x128xbf16, #tpu.memory_space<vmem>>, %arg4: memref<1x128xf32, #tpu.memory_space<vmem>>, %arg5: memref<1x128xf32, #tpu.memory_space<vmem>>, %arg6: memref<1x128xf32, #tpu.memory_space<vmem>>, %arg7: memref<128x256xbf16, #tpu.memory_space<vmem>>, %arg8: memref<1x256xf32, #tpu.memory_space<vmem>>, %arg9: memref<32x256xf32, #tpu.memory_space<vmem>>, %arg10: memref<32x128xbf16, #tpu.memory_space<vmem>>) attributes {dimension_semantics = [#tpu.dimension_semantics<parallel>, #tpu.dimension_semantics<arbitrary>], iteration_bounds = array<i64: 1, 1>, scalar_prefetch = 0 : i64, scratch_operands = 1 : i64, tpu.core_type = #tpu.core_type<tc>, window_params = [{transform_indices = @transform_0, window_bounds = array<i64: 32, 128>}, {pipeline_mode = #tpu.pipeline_mode<synchronous>, transform_indices = @transform_1, window_bounds = array<i64: 128, 128>}, {pipeline_mode = #tpu.pipeline_mode<synchronous>, transform_indices = @transform_2, window_bounds = array<i64: 1, 128>}, {pipeline_mode = #tpu.pipeline_mode<synchronous>, transform_indices = @transform_3, window_bounds = array<i64: 1, 128>}, {pipeline_mode = #tpu.pipeline_mode<synchronous>, transform_indices = @transform_4, window_bounds = array<i64: 1, 128>}, {transform_indices = @transform_5, window_bounds = array<i64: 128, 256>}, {transform_indices = @transform_6, window_bounds = array<i64: 1, 256>}, {transform_indices = @transform_7, window_bounds = array<i64: 32, 256>}]} {
    %c0_i32 = arith.constant 0 : i32
    %0 = arith.cmpi eq, %arg1, %c0_i32 : i32
    %1 = arith.extui %0 : i1 to i32
    %c0_i32_0 = arith.constant 0 : i32
    %2 = arith.cmpi ne, %1, %c0_i32_0 : i32
    scf.if %2 {
      %c0_8 = arith.constant 0 : index
      %c0_9 = arith.constant 0 : index
      %10 = vector.load %arg2[%c0_8, %c0_9] : memref<32x128xbf16, #tpu.memory_space<vmem>>, vector<32x128xbf16>
      %c0_10 = arith.constant 0 : index
      %c0_11 = arith.constant 0 : index
      %11 = vector.load %arg3[%c0_10, %c0_11] : memref<128x128xbf16, #tpu.memory_space<vmem>>, vector<128x128xbf16>
      %cst_12 = arith.constant dense<0.000000e+00> : vector<32x128xf32>
      %12 = tpu.matmul %10, %11, %cst_12 {dimension_numbers = #tpu.dot_dimension_numbers<[1], [0], [0], [1], [0, 0, 1, 1], [], []>} : vector<32x128xbf16>, vector<128x128xbf16>, vector<32x128xf32> -> vector<32x128xf32>
      %c0_13 = arith.constant 0 : index
      %c0_14 = arith.constant 0 : index
      %13 = vector.load %arg4[%c0_13, %c0_14] : memref<1x128xf32, #tpu.memory_space<vmem>>, vector<1x128xf32>
      %14 = vector.broadcast %13 : vector<1x128xf32> to vector<32x128xf32>
      %15 = arith.addf %12, %14 : vector<32x128xf32>
      %cst_15 = arith.constant 5.000000e-01 : f32
      %16 = vector.broadcast %cst_15 : f32 to vector<32x128xf32>
      %17 = arith.mulf %16, %15 : vector<32x128xf32>
      %cst_16 = arith.constant 0.707106769 : f32
      %18 = vector.broadcast %cst_16 : f32 to vector<32x128xf32>
      %19 = arith.mulf %15, %18 : vector<32x128xf32>
      %20 = math.erf %19 : vector<32x128xf32>
      %cst_17 = arith.constant 1.000000e+00 : f32
      %21 = vector.broadcast %cst_17 : f32 to vector<32x128xf32>
      %22 = arith.addf %21, %20 : vector<32x128xf32>
      %23 = arith.mulf %17, %22 : vector<32x128xf32>
      %cst_18 = arith.constant dense<0.000000e+00> : vector<32xf32>
      %24 = vector.multi_reduction <add>, %23, %cst_18 [1] : vector<32x128xf32> to vector<32xf32>
      %25 = vector.shape_cast %24 : vector<32xf32> to vector<32x1xf32>
      %cst_19 = arith.constant 1.280000e+02 : f32
      %26 = vector.broadcast %cst_19 : f32 to vector<32x1xf32>
      %27 = arith.divf %25, %26 : vector<32x1xf32>
      %28 = vector.broadcast %27 : vector<32x1xf32> to vector<32x128xf32>
      %29 = arith.subf %23, %28 : vector<32x128xf32>
      %30 = arith.mulf %29, %29 : vector<32x128xf32>
      %cst_20 = arith.constant dense<0.000000e+00> : vector<32xf32>
      %31 = vector.multi_reduction <add>, %30, %cst_20 [1] : vector<32x128xf32> to vector<32xf32>
      %32 = vector.shape_cast %31 : vector<32xf32> to vector<32x1xf32>
      %cst_21 = arith.constant 1.280000e+02 : f32
      %33 = vector.broadcast %cst_21 : f32 to vector<32x1xf32>
      %34 = arith.divf %32, %33 : vector<32x1xf32>
      %cst_22 = arith.constant 9.99999974E-6 : f32
      %35 = vector.broadcast %cst_22 : f32 to vector<32x1xf32>
      %36 = arith.addf %34, %35 : vector<32x1xf32>
      %37 = math.rsqrt %36 : vector<32x1xf32>
      %38 = vector.broadcast %37 : vector<32x1xf32> to vector<32x128xf32>
      %39 = arith.mulf %29, %38 : vector<32x128xf32>
      %c0_23 = arith.constant 0 : index
      %c0_24 = arith.constant 0 : index
      %40 = vector.load %arg5[%c0_23, %c0_24] : memref<1x128xf32, #tpu.memory_space<vmem>>, vector<1x128xf32>
      %41 = vector.broadcast %40 : vector<1x128xf32> to vector<32x128xf32>
      %42 = arith.mulf %39, %41 : vector<32x128xf32>
      %c0_25 = arith.constant 0 : index
      %c0_26 = arith.constant 0 : index
      %43 = vector.load %arg6[%c0_25, %c0_26] : memref<1x128xf32, #tpu.memory_space<vmem>>, vector<1x128xf32>
      %44 = vector.broadcast %43 : vector<1x128xf32> to vector<32x128xf32>
      %45 = arith.addf %42, %44 : vector<32x128xf32>
      %46 = arith.truncf %45 : vector<32x128xf32> to vector<32x128xbf16>
      %c0_27 = arith.constant 0 : index
      %c0_28 = arith.constant 0 : index
      %47 = vector.load %arg10[%c0_27, %c0_28] : memref<32x128xbf16, #tpu.memory_space<vmem>>, vector<32x128xbf16>
      tpu.vector_store %arg10[%c0_27, %c0_28], %46 {strides = array<i32>} : memref<32x128xbf16, #tpu.memory_space<vmem>>, vector<32x128xbf16>,
    } else {
    }
    %c0 = arith.constant 0 : index
    %c0_1 = arith.constant 0 : index
    %3 = vector.load %arg10[%c0, %c0_1] : memref<32x128xbf16, #tpu.memory_space<vmem>>, vector<32x128xbf16>
    %c0_2 = arith.constant 0 : index
    %c0_3 = arith.constant 0 : index
    %4 = vector.load %arg7[%c0_2, %c0_3] : memref<128x256xbf16, #tpu.memory_space<vmem>>, vector<128x256xbf16>
    %cst = arith.constant dense<0.000000e+00> : vector<32x256xf32>
    %5 = tpu.matmul %3, %4, %cst {dimension_numbers = #tpu.dot_dimension_numbers<[1], [0], [0], [1], [0, 0, 1, 1], [], []>} : vector<32x128xbf16>, vector<128x256xbf16>, vector<32x256xf32> -> vector<32x256xf32>
    %c0_4 = arith.constant 0 : index
    %c0_5 = arith.constant 0 : index
    %6 = vector.load %arg8[%c0_4, %c0_5] : memref<1x256xf32, #tpu.memory_space<vmem>>, vector<1x256xf32>
    %7 = vector.broadcast %6 : vector<1x256xf32> to vector<32x256xf32>
    %8 = arith.addf %5, %7 : vector<32x256xf32>
    %c0_6 = arith.constant 0 : index
    %c0_7 = arith.constant 0 : index
    %9 = vector.load %arg9[%c0_6, %c0_7] : memref<32x256xf32, #tpu.memory_space<vmem>>, vector<32x256xf32>
    tpu.vector_store %arg9[%c0_6, %c0_7], %8 {strides = array<i32>} : memref<32x256xf32, #tpu.memory_space<vmem>>, vector<32x256xf32>,
    return
  }
  func.func @transform_0(%arg0: i32, %arg1: i32) -> (i32, i32) {
    %c0_i32 = arith.constant 0 : i32
    %c0_i32_0 = arith.constant 0 : i32
    return %arg0, %c0_i32 : i32, i32
  }
  func.func @transform_1(%arg0: i32, %arg1: i32) -> (i32, i32) {
    %c0_i32 = arith.constant 0 : i32
    %c0_i32_0 = arith.constant 0 : i32
    %c0_i32_1 = arith.constant 0 : i32
    return %c0_i32, %c0_i32_0 : i32, i32
  }
  func.func @transform_2(%arg0: i32, %arg1: i32) -> (i32, i32) {
    %c0_i32 = arith.constant 0 : i32
    %c0_i32_0 = arith.constant 0 : i32
    %c0_i32_1 = arith.constant 0 : i32
    return %c0_i32, %c0_i32_0 : i32, i32
  }
  func.func @transform_3(%arg0: i32, %arg1: i32) -> (i32, i32) {
    %c0_i32 = arith.constant 0 : i32
    %c0_i32_0 = arith.constant 0 : i32
    %c0_i32_1 = arith.constant 0 : i32
    return %c0_i32, %c0_i32_0 : i32, i32
  }
  func.func @transform_4(%arg0: i32, %arg1: i32) -> (i32, i32) {
    %c0_i32 = arith.constant 0 : i32
    %c0_i32_0 = arith.constant 0 : i32
    %c0_i32_1 = arith.constant 0 : i32
    return %c0_i32, %c0_i32_0 : i32, i32
  }
  func.func @transform_5(%arg0: i32, %arg1: i32) -> (i32, i32) {
    %c0_i32 = arith.constant 0 : i32
    %c0_i32_0 = arith.constant 0 : i32
    return %c0_i32, %arg1 : i32, i32
  }
  func.func @transform_6(%arg0: i32, %arg1: i32) -> (i32, i32) {
    %c0_i32 = arith.constant 0 : i32
    %c0_i32_0 = arith.constant 0 : i32
    return %c0_i32, %arg1 : i32, i32
  }
  func.func @transform_7(%arg0: i32, %arg1: i32) -> (i32, i32) {
    %c0_i32 = arith.constant 0 : i32
    return %arg0, %arg1 : i32, i32
  }
}

</mosaic_0001>

<llo_original>
// kernel: bert_pretraining_heads.3
$region0: #{bert_pretraining_heads.3}
  #allocation0 [shape = 'u32[]', space=smem, size = 0x4, offset = 0x4, fixed_abs, tag = 'smem constant byte address 0x4 - core index']
  #allocation1 [shape = 'u32[72,128]{1,0:T(1,128)}', space=vmem, size = 0x9000, scoped, tag = 'internal scratch']
  %s0 = inlined_call_operand.vmem [shape: f32[8,128], index: 0, kind: input, shape index: {}]
  %s1 = inlined_call_operand.vmem [shape: f32[128,128], index: 1, kind: input, shape index: {}]
  %s2 = inlined_call_operand.vmem [shape: f32[1,128], index: 2, kind: input, shape index: {}]
  %s3 = inlined_call_operand.vmem [shape: f32[8,128], index: 3, kind: output, shape index: {}]
  %s4 = sld [smem:[#allocation0]]
  $region22: #{bert_pretraining_heads.3} parent=0
    _
  %s6 = ssub.s32 1, %s4
  %s7 = scalar_select 0, %s6, %s4
  // Predicated region
  $region2: #{bert_pretraining_heads.3} parent=0 // pred_check
    _
  $region3: #{bert_pretraining_heads.3} parent=0 // pred_check_branch
    %9 = sbr.rel (0) target = $region5
  $region4: #{bert_pretraining_heads.3} parent=0 // pred_region
    _
  $region5: #{bert_pretraining_heads.3} parent=0 // pred_fallthru
    _
  // Predicated region
  $region6: #{bert_pretraining_heads.3} parent=0 // pred_check
    _
  $region7: #{bert_pretraining_heads.3} parent=0 // pred_check_branch
    %11 = sbr.rel (0) target = $region9
  $region8: #{bert_pretraining_heads.3} parent=0 // pred_region
    _
  $region9: #{bert_pretraining_heads.3} parent=0 // pred_fallthru
    _
  // Predicated region
  $region10: #{bert_pretraining_heads.3} parent=0 // pred_check
    _
  $region11: #{bert_pretraining_heads.3} parent=0 // pred_check_branch
    %13 = sbr.rel (0) target = $region13
  $region12: #{bert_pretraining_heads.3} parent=0 // pred_region
    _
  $region13: #{bert_pretraining_heads.3} parent=0 // pred_fallthru
    _
  %v14 = vld [vmem:[%s0] sm:$0xff]
  %v15 = vld [vmem:[%s1] sm:$0xff]
  %v16 = vld [vmem:[%s1 + $0x8] sm:$0xff]
  %v17 = vld [vmem:[%s1 + $0x10] sm:$0xff]
  %v18 = vld [vmem:[%s1 + $0x18] sm:$0xff]
  %v19 = vld [vmem:[%s1 + $0x20] sm:$0xff]
  %v20 = vld [vmem:[%s1 + $0x28] sm:$0xff]
  %v21 = vld [vmem:[%s1 + $0x30] sm:$0xff]
  %v22 = vld [vmem:[%s1 + $0x38] sm:$0xff]
  %v23 = vld [vmem:[%s1 + $0x40] sm:$0xff]
  %v24 = vld [vmem:[%s1 + $0x48] sm:$0xff]
  %v25 = vld [vmem:[%s1 + $0x50] sm:$0xff]
  %v26 = vld [vmem:[%s1 + $0x58] sm:$0xff]
  %v27 = vld [vmem:[%s1 + $0x60] sm:$0xff]
  %v28 = vld [vmem:[%s1 + $0x68] sm:$0xff]
  %v29 = vld [vmem:[%s1 + $0x70] sm:$0xff]
  %v30 = vld [vmem:[%s1 + $0x78] sm:$0xff]
  %v31 = vld [vmem:[%s2] sm:$0x1]
  %v33 = vperm.slane %v31, 0
  %35 = vmatpush.msra.mxu0 %v30
  %36 = vmatpush.msra.mxu0 %v29
  %37 = vmatpush.msra.mxu0 %v28
  %38 = vmatpush.msra.mxu0 %v27
  %39 = vmatpush.msra.mxu0 %v26
  %40 = vmatpush.msra.mxu0 %v25
  %41 = vmatpush.msra.mxu0 %v24
  %42 = vmatpush.msra.mxu0 %v23
  %43 = vmatpush.msra.mxu0 %v22
  %44 = vmatpush.msra.mxu0 %v21
  %45 = vmatpush.msra.mxu0 %v20
  %46 = vmatpush.msra.mxu0 %v19
  %47 = vmatpush.msra.mxu0 %v18
  %48 = vmatpush.msra.mxu0 %v17
  %49 = vmatpush.msra.mxu0 %v16
  %50 = vmatpush.msra.mxu0 %v15
  %51 = vmatmul.f32.gmra.mxu0 %v14
  %v52 = vpop.f32.mrf.mxu0
  %v53 = vadd.f32 %v33, %v52
  %54 = vdwg.mxu0
  %55 = vst [vmem:[%s3] sm:$0xff] %v53
  // Predicated region
  $region14: #{bert_pretraining_heads.3} parent=0 // pred_check
    _
  $region15: #{bert_pretraining_heads.3} parent=0 // pred_check_branch
    %57 = sbr.rel (0) target = $region17
  $region16: #{bert_pretraining_heads.3} parent=0 // pred_region
    _
  $region17: #{bert_pretraining_heads.3} parent=0 // pred_fallthru
    _
  // Predicated region
  $region18: #{bert_pretraining_heads.3} parent=0 // pred_check
    _
  $region19: #{bert_pretraining_heads.3} parent=0 // pred_check_branch
    %59 = sbr.rel (0) target = $region21
  $region20: #{bert_pretraining_heads.3} parent=0 // pred_region
    _
  $region21: #{bert_pretraining_heads.3} parent=0 // pred_fallthru
    _

// kernel: bert_pretraining_heads.2
$region0: #{bert_pretraining_heads.2}
  #allocation0 [shape = 'u32[]', space=smem, size = 0x4, offset = 0x4, fixed_abs, tag = 'smem constant byte address 0x4 - core index']
  #allocation1 [shape = 'u32[72,128]{1,0:T(1,128)}', space=vmem, size = 0x9000, scoped, tag = 'internal scratch']
  #allocation2 [shape = 'bf16[32,128]{1,0:T(8,128)(2,1)}', space=vmem, size = 0x2000, scoped, tag = 'scratch operand']
  %s0 = inlined_call_operand.vmem [shape: bf16[32,128], index: 0, kind: input, shape index: {}]
  %s1 = inlined_call_operand.vmem [shape: bf16[128,128], index: 1, kind: input, shape index: {}]
  %s2 = inlined_call_operand.vmem [shape: f32[1,128], index: 2, kind: input, shape index: {}]
  %s3 = inlined_call_operand.vmem [shape: f32[1,128], index: 3, kind: input, shape index: {}]
  %s4 = inlined_call_operand.vmem [shape: f32[1,128], index: 4, kind: input, shape index: {}]
  %s5 = inlined_call_operand.vmem [shape: bf16[128,256], index: 5, kind: input, shape index: {}]
  %s6 = inlined_call_operand.vmem [shape: f32[1,256], index: 6, kind: input, shape index: {}]
  %s7 = inlined_call_operand.hbm [shape: f32[32,256], index: 7, kind: output, shape index: {}]
  %s8 = sld [smem:[#allocation0]]
  $region42: #{bert_pretraining_heads.2} parent=0
    _
  %s10 = ssub.s32 1, %s8
  %s11 = scalar_select 0, %s10, %s8
  $region1: #{bert_pretraining_heads.2} parent=0
    #allocation3 [shape = 'u8[32768]{0}', space=vmem, size = 0x8000, scoped, tag = 'output window, operand 0, single buffered']
    #allocation4 [shape = 's32[1]{0}', space=sflag, size = 0x4, scoped, tag = 'scoped memory for bert_pretraining_heads.2']
    %12 = vsyncpa [#allocation4], 0
    // Predicated region
    $region2: #{bert_pretraining_heads.2} parent=1 // pred_check
      _
    $region3: #{bert_pretraining_heads.2} parent=1 // pred_check_branch
      %14 = sbr.rel (0) target = $region5
    $region4: #{bert_pretraining_heads.2} parent=1 // pred_region
      _
    $region5: #{bert_pretraining_heads.2} parent=1 // pred_fallthru
      _
    // Predicated region
    $region6: #{bert_pretraining_heads.2} parent=1 // pred_check
      _
    $region7: #{bert_pretraining_heads.2} parent=1 // pred_check_branch
      %16 = sbr.rel (0) target = $region9
    $region8: #{bert_pretraining_heads.2} parent=1 // pred_region
      _
    $region9: #{bert_pretraining_heads.2} parent=1 // pred_fallthru
      _
    // Predicated region
    $region10: #{bert_pretraining_heads.2} parent=1 // pred_check
      _
    $region11: #{bert_pretraining_heads.2} parent=1 // pred_check_branch
      %18 = sbr.rel (0) target = $region13
    $region12: #{bert_pretraining_heads.2} parent=1 // pred_region
      _
    $region13: #{bert_pretraining_heads.2} parent=1 // pred_fallthru
      _
    // Predicated region
    $region14: #{bert_pretraining_heads.2} parent=1 // pred_check
      _
    $region15: #{bert_pretraining_heads.2} parent=1 // pred_check_branch
      %20 = sbr.rel (0) target = $region17
    $region16: #{bert_pretraining_heads.2} parent=1 // pred_region
      _
    $region17: #{bert_pretraining_heads.2} parent=1 // pred_fallthru
      _
    // Predicated region
    $region18: #{bert_pretraining_heads.2} parent=1 // pred_check
      _
    $region19: #{bert_pretraining_heads.2} parent=1 // pred_check_branch
      %22 = sbr.rel (0) target = $region21
    $region20: #{bert_pretraining_heads.2} parent=1 // pred_region
      _
    $region21: #{bert_pretraining_heads.2} parent=1 // pred_fallthru
      _
    // Predicated region
    $region22: #{bert_pretraining_heads.2} parent=1 // pred_check
      _
    $region23: #{bert_pretraining_heads.2} parent=1 // pred_check_branch
      %24 = sbr.rel (0) target = $region25
    $region24: #{bert_pretraining_heads.2} parent=1 // pred_region
      _
    $region25: #{bert_pretraining_heads.2} parent=1 // pred_fallthru
      _
    // Predicated region
    $region26: #{bert_pretraining_heads.2} parent=1 // pred_check
      _
    $region27: #{bert_pretraining_heads.2} parent=1 // pred_check_branch
      %26 = sbr.rel (0) target = $region29
    $region28: #{bert_pretraining_heads.2} parent=1 // pred_region
      _
    $region29: #{bert_pretraining_heads.2} parent=1 // pred_fallthru
      _
    %p27 = scmp.eq.s32.totalorder 0, 0
    // Predicated region
    $region30: #{bert_pretraining_heads.2} parent=1 // pred_check
      %p28 = pneg %p27
    $region31: #{bert_pretraining_heads.2} parent=1 // pred_check_branch
      %30 = sbr.rel (%p28) target = $region33
    $region32: #{bert_pretraining_heads.2} parent=1 // pred_region
      %v31 = vld [vmem:[%s0] sm:$0xf]
      %v32 = vld [vmem:[%s0 + $0x4] sm:$0xf]
      %v33 = vld [vmem:[%s0 + $0x8] sm:$0xf]
      %v34 = vld [vmem:[%s0 + $0xc] sm:$0xf]
      %v35 = vld [vmem:[%s1] sm:$0xf]
      %v36 = vld [vmem:[%s1 + $0x4] sm:$0xf]
      %v37 = vld [vmem:[%s1 + $0x8] sm:$0xf]
      %v38 = vld [vmem:[%s1 + $0xc] sm:$0xf]
      %v39 = vld [vmem:[%s1 + $0x10] sm:$0xf]
      %v40 = vld [vmem:[%s1 + $0x14] sm:$0xf]
      %v41 = vld [vmem:[%s1 + $0x18] sm:$0xf]
      %v42 = vld [vmem:[%s1 + $0x1c] sm:$0xf]
      %v43 = vld [vmem:[%s1 + $0x20] sm:$0xf]
      %v44 = vld [vmem:[%s1 + $0x24] sm:$0xf]
      %v45 = vld [vmem:[%s1 + $0x28] sm:$0xf]
      %v46 = vld [vmem:[%s1 + $0x2c] sm:$0xf]
      %v47 = vld [vmem:[%s1 + $0x30] sm:$0xf]
      %v48 = vld [vmem:[%s1 + $0x34] sm:$0xf]
      %v49 = vld [vmem:[%s1 + $0x38] sm:$0xf]
      %v50 = vld [vmem:[%s1 + $0x3c] sm:$0xf]
      %v51 = vld [vmem:[%s2] sm:$0x1]
      %v53 = vperm.slane %v51, 0
      %v59 = vunpack.c.l.b16 %v31
      %v60 = vunpack.c.l.b16 %v32
      %v61 = vunpack.c.l.b16 %v33
      %v62 = vunpack.c.l.b16 %v34
      %v63 = vpack.c.b16 %v60, %v59
      %v64 = vpack.c.b16 %v62, %v61
      %v83 = vunpack.c.l.b16 %v35
      %v84 = vunpack.c.l.b16 %v36
      %v85 = vunpack.c.l.b16 %v37
      %v86 = vunpack.c.l.b16 %v38
      %v87 = vunpack.c.l.b16 %v39
      %v88 = vunpack.c.l.b16 %v40
      %v89 = vunpack.c.l.b16 %v41
      %v90 = vunpack.c.l.b16 %v42
      %v91 = vunpack.c.l.b16 %v43
      %v92 = vunpack.c.l.b16 %v44
      %v93 = vunpack.c.l.b16 %v45
      %v94 = vunpack.c.l.b16 %v46
      %v95 = vunpack.c.l.b16 %v47
      %v96 = vunpack.c.l.b16 %v48
      %v97 = vunpack.c.l.b16 %v49
      %v98 = vunpack.c.l.b16 %v50
      %v99 = vpack.c.b16 %v84, %v83
      %v100 = vpack.c.b16 %v86, %v85
      %v101 = vpack.c.b16 %v88, %v87
      %v102 = vpack.c.b16 %v90, %v89
      %v103 = vpack.c.b16 %v92, %v91
      %v104 = vpack.c.b16 %v94, %v93
      %v105 = vpack.c.b16 %v96, %v95
      %v106 = vpack.c.b16 %v98, %v97
      %115 = vmatpush.bf16.msra.mxu0 %v106
      %116 = vmatpush.bf16.msra.mxu0 %v105
      %117 = vmatpush.bf16.msra.mxu0 %v104
      %118 = vmatpush.bf16.msra.mxu0 %v103
      %119 = vmatpush.bf16.msra.mxu0 %v102
      %120 = vmatpush.bf16.msra.mxu0 %v101
      %121 = vmatpush.bf16.msra.mxu0 %v100
      %122 = vmatpush.bf16.msra.mxu0 %v99
      %123 = vmatmul.bf16.gmra.mxu0 %v63
      %v124 = vpop.f32.mrf.mxu0
      %v125 = vadd.f32 %v53, %v124
      %v126 = vpop.f32.mrf.mxu0
      %v127 = vadd.f32 %v53, %v126
      %128 = vmatmul.bf16.gmra.mxu0 %v64
      %v129 = vpop.f32.mrf.mxu0
      %v130 = vadd.f32 %v53, %v129
      %v131 = vpop.f32.mrf.mxu0
      %v132 = vadd.f32 %v53, %v131
      %133 = vdwg.mxu0
      %v134 = vmul.f32 %v125, 0.5
      %v135 = vmul.f32 %v127, 0.5
      %v136 = vmul.f32 %v130, 0.5
      %v137 = vmul.f32 %v132, 0.5
      %v138 = vmul.f32 %v125, 0.70710677
      %v139 = vmul.f32 %v127, 0.70710677
      %v140 = vmul.f32 %v130, 0.70710677
      %v141 = vmul.f32 %v132, 0.70710677
      %v142 = vmul.f32 %v138, %v138
      %v143 = vmin.f32 16.0, %v142
      %v144 = vmul.f32 %v143, 2.1237322e-06
      %v145 = vadd.f32 %v144, 0.00028619796
      %v146 = vmul.f32 %v143, %v145
      %v147 = vadd.f32 %v146, 0.0036580483
      %v148 = vmul.f32 %v143, %v147
      %v149 = vadd.f32 %v148, 0.05243302
      %v150 = vmul.f32 %v143, %v149
      %v151 = vadd.f32 %v150, 0.18741608
      %v152 = vmul.f32 %v143, %v151
      %v153 = vadd.f32 %v152, 1.1283791
      %v154 = vmul.f32 %v138, %v153
      %v155 = vmul.f32 %v143, 3.8918573e-05
      %v156 = vadd.f32 %v155, 0.001143296
      %v157 = vmul.f32 %v143, %v156
      %v158 = vadd.f32 %v157, 0.014752088
      %v159 = vmul.f32 %v143, %v158
      %v160 = vadd.f32 %v159, 0.112945676
      %v161 = vmul.f32 %v143, %v160
      %v162 = vadd.f32 %v161, 0.4994258
      %v163 = vmul.f32 %v143, %v162
      %v164 = vadd.f32 %v163, 1.0
      %v165 = vrcp.pop %v164
      %v166 = vmul.f32 %v164, %v165
      %v167 = vsub.f32 1.0, %v166
      %v168 = vmul.f32 %v165, %v167
      %v169 = vadd.f32 %v165, %v168
      %vm170 = vweird.f32 %v164
      %vm171 = vweird.f32 %v165
      %vm172 = vmor %vm170, %vm171
      %v173 = vsel %vm172, %v165, %v169
      %v174 = vand.u32 2147483647, %v164
      %vm175 = vcmp.eq.f32.partialorder %v174, 8.507059e+37
      %v176 = vand.u32 %v164, 2147483648
      %v177 = vor.u32 1.1754944e-38, %v176
      %v178 = vsel %vm175, %v177, %v173
      %v179 = vmul.f32 %v154, %v178
      %v180 = vmin.f32 %v179, 1.0
      %v181 = vmax.f32 %v180, -1.0
      %v182 = vmul.f32 %v139, %v139
      %v183 = vmin.f32 16.0, %v182
      %v184 = vmul.f32 %v183, 2.1237322e-06
      %v185 = vadd.f32 %v184, 0.00028619796
      %v186 = vmul.f32 %v183, %v185
      %v187 = vadd.f32 %v186, 0.0036580483
      %v188 = vmul.f32 %v183, %v187
      %v189 = vadd.f32 %v188, 0.05243302
      %v190 = vmul.f32 %v183, %v189
      %v191 = vadd.f32 %v190, 0.18741608
      %v192 = vmul.f32 %v183, %v191
      %v193 = vadd.f32 %v192, 1.1283791
      %v194 = vmul.f32 %v139, %v193
      %v195 = vmul.f32 %v183, 3.8918573e-05
      %v196 = vadd.f32 %v195, 0.001143296
      %v197 = vmul.f32 %v183, %v196
      %v198 = vadd.f32 %v197, 0.014752088
      %v199 = vmul.f32 %v183, %v198
      %v200 = vadd.f32 %v199, 0.112945676
      %v201 = vmul.f32 %v183, %v200
      %v202 = vadd.f32 %v201, 0.4994258
      %v203 = vmul.f32 %v183, %v202
      %v204 = vadd.f32 %v203, 1.0
      %v205 = vrcp.pop %v204
      %v206 = vmul.f32 %v204, %v205
      %v207 = vsub.f32 1.0, %v206
      %v208 = vmul.f32 %v205, %v207
      %v209 = vadd.f32 %v205, %v208
      %vm210 = vweird.f32 %v204
      %vm211 = vweird.f32 %v205
      %vm212 = vmor %vm210, %vm211
      %v213 = vsel %vm212, %v205, %v209
      %v214 = vand.u32 2147483647, %v204
      %vm215 = vcmp.eq.f32.partialorder %v214, 8.507059e+37
      %v216 = vand.u32 %v204, 2147483648
      %v217 = vor.u32 1.1754944e-38, %v216
      %v218 = vsel %vm215, %v217, %v213
      %v219 = vmul.f32 %v194, %v218
      %v220 = vmin.f32 %v219, 1.0
      %v221 = vmax.f32 %v220, -1.0
      %v222 = vmul.f32 %v140, %v140
      %v223 = vmin.f32 16.0, %v222
      %v224 = vmul.f32 %v223, 2.1237322e-06
      %v225 = vadd.f32 %v224, 0.00028619796
      %v226 = vmul.f32 %v223, %v225
      %v227 = vadd.f32 %v226, 0.0036580483
      %v228 = vmul.f32 %v223, %v227
      %v229 = vadd.f32 %v228, 0.05243302
      %v230 = vmul.f32 %v223, %v229
      %v231 = vadd.f32 %v230, 0.18741608
      %v232 = vmul.f32 %v223, %v231
      %v233 = vadd.f32 %v232, 1.1283791
      %v234 = vmul.f32 %v140, %v233
      %v235 = vmul.f32 %v223, 3.8918573e-05
      %v236 = vadd.f32 %v235, 0.001143296
      %v237 = vmul.f32 %v223, %v236
      %v238 = vadd.f32 %v237, 0.014752088
      %v239 = vmul.f32 %v223, %v238
      %v240 = vadd.f32 %v239, 0.112945676
      %v241 = vmul.f32 %v223, %v240
      %v242 = vadd.f32 %v241, 0.4994258
      %v243 = vmul.f32 %v223, %v242
      %v244 = vadd.f32 %v243, 1.0
      %v245 = vrcp.pop %v244
      %v246 = vmul.f32 %v244, %v245
      %v247 = vsub.f32 1.0, %v246
      %v248 = vmul.f32 %v245, %v247
      %v249 = vadd.f32 %v245, %v248
      %vm250 = vweird.f32 %v244
      %vm251 = vweird.f32 %v245
      %vm252 = vmor %vm250, %vm251
      %v253 = vsel %vm252, %v245, %v249
      %v254 = vand.u32 2147483647, %v244
      %vm255 = vcmp.eq.f32.partialorder %v254, 8.507059e+37
      %v256 = vand.u32 %v244, 2147483648
      %v257 = vor.u32 1.1754944e-38, %v256
      %v258 = vsel %vm255, %v257, %v253
      %v259 = vmul.f32 %v234, %v258
      %v260 = vmin.f32 %v259, 1.0
      %v261 = vmax.f32 %v260, -1.0
      %v262 = vmul.f32 %v141, %v141
      %v263 = vmin.f32 16.0, %v262
      %v264 = vmul.f32 %v263, 2.1237322e-06
      %v265 = vadd.f32 %v264, 0.00028619796
      %v266 = vmul.f32 %v263, %v265
      %v267 = vadd.f32 %v266, 0.0036580483
      %v268 = vmul.f32 %v263, %v267
      %v269 = vadd.f32 %v268, 0.05243302
      %v270 = vmul.f32 %v263, %v269
      %v271 = vadd.f32 %v270, 0.18741608
      %v272 = vmul.f32 %v263, %v271
      %v273 = vadd.f32 %v272, 1.1283791
      %v274 = vmul.f32 %v141, %v273
      %v275 = vmul.f32 %v263, 3.8918573e-05
      %v276 = vadd.f32 %v275, 0.001143296
      %v277 = vmul.f32 %v263, %v276
      %v278 = vadd.f32 %v277, 0.014752088
      %v279 = vmul.f32 %v263, %v278
      %v280 = vadd.f32 %v279, 0.112945676
      %v281 = vmul.f32 %v263, %v280
      %v282 = vadd.f32 %v281, 0.4994258
      %v283 = vmul.f32 %v263, %v282
      %v284 = vadd.f32 %v283, 1.0
      %v285 = vrcp.pop %v284
      %v286 = vmul.f32 %v284, %v285
      %v287 = vsub.f32 1.0, %v286
      %v288 = vmul.f32 %v285, %v287
      %v289 = vadd.f32 %v285, %v288
      %vm290 = vweird.f32 %v284
      %vm291 = vweird.f32 %v285
      %vm292 = vmor %vm290, %vm291
      %v293 = vsel %vm292, %v285, %v289
      %v294 = vand.u32 2147483647, %v284
      %vm295 = vcmp.eq.f32.partialorder %v294, 8.507059e+37
      %v296 = vand.u32 %v284, 2147483648
      %v297 = vor.u32 1.1754944e-38, %v296
      %v298 = vsel %vm295, %v297, %v293
      %v299 = vmul.f32 %v274, %v298
      %v300 = vmin.f32 %v299, 1.0
      %v301 = vmax.f32 %v300, -1.0
      %v302 = vadd.f32 %v181, 1.0
      %v303 = vadd.f32 %v221, 1.0
      %v304 = vadd.f32 %v261, 1.0
      %v305 = vadd.f32 %v301, 1.0
      %v306 = vmul.f32 %v134, %v302
      %v307 = vmul.f32 %v135, %v303
      %v308 = vmul.f32 %v136, %v304
      %v309 = vmul.f32 %v137, %v305
      %310 = vadd.xlane.f32.xlu0 %v306
      %v311 = vpop.xlane.xlu0 %310
      %312 = vadd.xlane.f32.xlu0 %v307
      %v313 = vpop.xlane.xlu0 %312
      %314 = vadd.xlane.f32.xlu0 %v308
      %v315 = vpop.xlane.xlu0 %314
      %316 = vadd.xlane.f32.xlu0 %v309
      %v317 = vpop.xlane.xlu0 %316
      %v318 = vrcp.pop 128.0
      %v319 = vmul.f32 128.0, %v318
      %v320 = vsub.f32 1.0, %v319
      %v321 = vmul.f32 %v318, %v320
      %v322 = vadd.f32 %v318, %v321
      %vm323 = vweird.f32 %v318
      %v324 = vsel %vm323, %v318, %v322
      %v325 = vmul.f32 %v311, %v324
      %v326 = vmul.f32 %v313, %v324
      %v327 = vmul.f32 %v315, %v324
      %v328 = vmul.f32 %v317, %v324
      %v329 = vsub.f32 %v306, %v325
      %v330 = vsub.f32 %v307, %v326
      %v331 = vsub.f32 %v308, %v327
      %v332 = vsub.f32 %v309, %v328
      %v333 = vmul.f32 %v329, %v329
      %v334 = vmul.f32 %v330, %v330
      %v335 = vmul.f32 %v331, %v331
      %v336 = vmul.f32 %v332, %v332
      %337 = vadd.xlane.f32.xlu0 %v333
      %v338 = vpop.xlane.xlu0 %337
      %339 = vadd.xlane.f32.xlu0 %v334
      %v340 = vpop.xlane.xlu0 %339
      %341 = vadd.xlane.f32.xlu0 %v335
      %v342 = vpop.xlane.xlu0 %341
      %343 = vadd.xlane.f32.xlu0 %v336
      %v344 = vpop.xlane.xlu0 %343
      %v345 = vmul.f32 %v338, %v324
      %v346 = vmul.f32 %v340, %v324
      %v347 = vmul.f32 %v342, %v324
      %v348 = vmul.f32 %v344, %v324
      %v349 = vadd.f32 %v345, 1e-05
      %v350 = vadd.f32 %v346, 1e-05
      %v351 = vadd.f32 %v347, 1e-05
      %v352 = vadd.f32 %v348, 1e-05
      %v353 = vrsqrt.pop %v349
      %v354 = vmul.f32 %v353, %v349
      %v355 = vmul.f32 %v354, %v353
      %v356 = vmul.f32 0.5, %v355
      %v357 = vsub.f32 1.5, %v356
      %v358 = vmul.f32 %v353, %v357
      %vm359 = vweird.f32 %v349
      %vm360 = vweird.f32 %v353
      %vm361 = vmor %vm359, %vm360
      %v362 = vsel %vm361, %v353, %v358
      %v363 = vrsqrt.pop %v350
      %v364 = vmul.f32 %v363, %v350
      %v365 = vmul.f32 %v364, %v363
      %v366 = vmul.f32 0.5, %v365
      %v367 = vsub.f32 1.5, %v366
      %v368 = vmul.f32 %v363, %v367
      %vm369 = vweird.f32 %v350
      %vm370 = vweird.f32 %v363
      %vm371 = vmor %vm369, %vm370
      %v372 = vsel %vm371, %v363, %v368
      %v373 = vrsqrt.pop %v351
      %v374 = vmul.f32 %v373, %v351
      %v375 = vmul.f32 %v374, %v373
      %v376 = vmul.f32 0.5, %v375
      %v377 = vsub.f32 1.5, %v376
      %v378 = vmul.f32 %v373, %v377
      %vm379 = vweird.f32 %v351
      %vm380 = vweird.f32 %v373
      %vm381 = vmor %vm379, %vm380
      %v382 = vsel %vm381, %v373, %v378
      %v383 = vrsqrt.pop %v352
      %v384 = vmul.f32 %v383, %v352
      %v385 = vmul.f32 %v384, %v383
      %v386 = vmul.f32 0.5, %v385
      %v387 = vsub.f32 1.5, %v386
      %v388 = vmul.f32 %v383, %v387
      %vm389 = vweird.f32 %v352
      %vm390 = vweird.f32 %v383
      %vm391 = vmor %vm389, %vm390
      %v392 = vsel %vm391, %v383, %v388
      %v393 = vmul.f32 %v329, %v362
      %v394 = vmul.f32 %v330, %v372
      %v395 = vmul.f32 %v331, %v382
      %v396 = vmul.f32 %v332, %v392
      %v397 = vld [vmem:[%s3] sm:$0x1]
      %v399 = vperm.slane %v397, 0
      %v401 = vmul.f32 %v393, %v399
      %v402 = vmul.f32 %v394, %v399
      %v403 = vmul.f32 %v395, %v399
      %v404 = vmul.f32 %v396, %v399
      %v405 = vld [vmem:[%s4] sm:$0x1]
      %v407 = vperm.slane %v405, 0
      %v409 = vadd.f32 %v401, %v407
      %v410 = vadd.f32 %v402, %v407
      %v411 = vadd.f32 %v403, %v407
      %v412 = vadd.f32 %v404, %v407
      %v413 = vpack.c.bf16 %v409, %v409
      %v414 = vpack.c.bf16 %v410, %v410
      %v415 = vpack.c.bf16 %v411, %v411
      %v416 = vpack.c.bf16 %v412, %v412
      %417 = vst [vmem:[#allocation2] sm:$0xf] %v413
      %418 = vst [vmem:[#allocation2 + $0x4] sm:$0xf] %v414
      %419 = vst [vmem:[#allocation2 + $0x8] sm:$0xf] %v415
      %420 = vst [vmem:[#allocation2 + $0xc] sm:$0xf] %v416
    $region33: #{bert_pretraining_heads.2} parent=1 // pred_fallthru
      _
    %v421 = vld [vmem:[#allocation2] sm:$0xf]
    %v422 = vld [vmem:[#allocation2 + $0x4] sm:$0xf]
    %v423 = vld [vmem:[#allocation2 + $0x8] sm:$0xf]
    %v424 = vld [vmem:[#allocation2 + $0xc] sm:$0xf]
    %v425 = vld [vmem:[%s5] sm:$0xff]
    %v426 = vld [vmem:[%s5 + $0x8] sm:$0xff]
    %v427 = vld [vmem:[%s5 + $0x10] sm:$0xff]
    %v428 = vld [vmem:[%s5 + $0x18] sm:$0xff]
    %v429 = vld [vmem:[%s5 + $0x20] sm:$0xff]
    %v430 = vld [vmem:[%s5 + $0x28] sm:$0xff]
    %v431 = vld [vmem:[%s5 + $0x30] sm:$0xff]
    %v432 = vld [vmem:[%s5 + $0x38] sm:$0xff]
    %v433 = vld [vmem:[%s5 + $0x40] sm:$0xff]
    %v434 = vld [vmem:[%s5 + $0x48] sm:$0xff]
    %v435 = vld [vmem:[%s5 + $0x50] sm:$0xff]
    %v436 = vld [vmem:[%s5 + $0x58] sm:$0xff]
    %v437 = vld [vmem:[%s5 + $0x60] sm:$0xff]
    %v438 = vld [vmem:[%s5 + $0x68] sm:$0xff]
    %v439 = vld [vmem:[%s5 + $0x70] sm:$0xff]
    %v440 = vld [vmem:[%s5 + $0x78] sm:$0xff]
    %v441 = vld [vmem:[%s6] sm:$0x3]
    %v443 = vperm.slane %v441, 0
    %v444 = vperm.slane %v441, 1
    %v451 = vunpack.c.l.b16 %v421
    %v452 = vunpack.c.l.b16 %v422
    %v453 = vunpack.c.l.b16 %v423
    %v454 = vunpack.c.l.b16 %v424
    %v455 = vpack.c.b16 %v452, %v451
    %v456 = vpack.c.b16 %v454, %v453
    %v475 = vunpack.c.l.b16 %v425
    %v476 = vunpack.c.h.b16 %v425
    %v477 = vunpack.c.l.b16 %v426
    %v478 = vunpack.c.h.b16 %v426
    %v479 = vunpack.c.l.b16 %v427
    %v480 = vunpack.c.h.b16 %v427
    %v481 = vunpack.c.l.b16 %v428
    %v482 = vunpack.c.h.b16 %v428
    %v483 = vunpack.c.l.b16 %v429
    %v484 = vunpack.c.h.b16 %v429
    %v485 = vunpack.c.l.b16 %v430
    %v486 = vunpack.c.h.b16 %v430
    %v487 = vunpack.c.l.b16 %v431
    %v488 = vunpack.c.h.b16 %v431
    %v489 = vunpack.c.l.b16 %v432
    %v490 = vunpack.c.h.b16 %v432
    %v491 = vunpack.c.l.b16 %v433
    %v492 = vunpack.c.h.b16 %v433
    %v493 = vunpack.c.l.b16 %v434
    %v494 = vunpack.c.h.b16 %v434
    %v495 = vunpack.c.l.b16 %v435
    %v496 = vunpack.c.h.b16 %v435
    %v497 = vunpack.c.l.b16 %v436
    %v498 = vunpack.c.h.b16 %v436
    %v499 = vunpack.c.l.b16 %v437
    %v500 = vunpack.c.h.b16 %v437
    %v501 = vunpack.c.l.b16 %v438
    %v502 = vunpack.c.h.b16 %v438
    %v503 = vunpack.c.l.b16 %v439
    %v504 = vunpack.c.h.b16 %v439
    %v505 = vunpack.c.l.b16 %v440
    %v506 = vunpack.c.h.b16 %v440
    %v507 = vpack.c.b16 %v477, %v475
    %v508 = vpack.c.b16 %v478, %v476
    %v509 = vpack.c.b16 %v481, %v479
    %v510 = vpack.c.b16 %v482, %v480
    %v511 = vpack.c.b16 %v485, %v483
    %v512 = vpack.c.b16 %v486, %v484
    %v513 = vpack.c.b16 %v489, %v487
    %v514 = vpack.c.b16 %v490, %v488
    %v515 = vpack.c.b16 %v493, %v491
    %v516 = vpack.c.b16 %v494, %v492
    %v517 = vpack.c.b16 %v497, %v495
    %v518 = vpack.c.b16 %v498, %v496
    %v519 = vpack.c.b16 %v501, %v499
    %v520 = vpack.c.b16 %v502, %v500
    %v521 = vpack.c.b16 %v505, %v503
    %v522 = vpack.c.b16 %v506, %v504
    %539 = vmatpush.bf16.msra.mxu0 %v521
    %540 = vmatpush.bf16.msra.mxu0 %v519
    %541 = vmatpush.bf16.msra.mxu0 %v517
    %542 = vmatpush.bf16.msra.mxu0 %v515
    %543 = vmatpush.bf16.msra.mxu0 %v513
    %544 = vmatpush.bf16.msra.mxu0 %v511
    %545 = vmatpush.bf16.msra.mxu0 %v509
    %546 = vmatpush.bf16.msra.mxu0 %v507
    %547 = vmatmul.bf16.gmra.mxu0 %v455
    %v548 = vpop.f32.mrf.mxu0
    %v549 = vadd.f32 %v443, %v548
    %v550 = vpop.f32.mrf.mxu0
    %v551 = vadd.f32 %v443, %v550
    %552 = vmatmul.bf16.gmra.mxu0 %v456
    %v553 = vpop.f32.mrf.mxu0
    %v554 = vadd.f32 %v443, %v553
    %v555 = vpop.f32.mrf.mxu0
    %v556 = vadd.f32 %v443, %v555
    %557 = vdwg.mxu0
    %558 = vmatpush.bf16.msra.mxu0 %v522
    %559 = vmatpush.bf16.msra.mxu0 %v520
    %560 = vmatpush.bf16.msra.mxu0 %v518
    %561 = vmatpush.bf16.msra.mxu0 %v516
    %562 = vmatpush.bf16.msra.mxu0 %v514
    %563 = vmatpush.bf16.msra.mxu0 %v512
    %564 = vmatpush.bf16.msra.mxu0 %v510
    %565 = vmatpush.bf16.msra.mxu0 %v508
    %566 = vmatmul.bf16.gmra.mxu0 %v455
    %v567 = vpop.f32.mrf.mxu0
    %v568 = vadd.f32 %v444, %v567
    %v569 = vpop.f32.mrf.mxu0
    %v570 = vadd.f32 %v444, %v569
    %571 = vmatmul.bf16.gmra.mxu0 %v456
    %v572 = vpop.f32.mrf.mxu0
    %v573 = vadd.f32 %v444, %v572
    %v574 = vpop.f32.mrf.mxu0
    %v575 = vadd.f32 %v444, %v574
    %576 = vdwg.mxu0
    %577 = vst [vmem:[#allocation3] sm:$0xff] %v549
    %578 = vst [vmem:[#allocation3 + $0x8] sm:$0xff] %v568
    %579 = vst [vmem:[#allocation3 + $0x10] sm:$0xff] %v551
    %580 = vst [vmem:[#allocation3 + $0x18] sm:$0xff] %v570
    %581 = vst [vmem:[#allocation3 + $0x20] sm:$0xff] %v554
    %582 = vst [vmem:[#allocation3 + $0x28] sm:$0xff] %v573
    %583 = vst [vmem:[#allocation3 + $0x30] sm:$0xff] %v556
    %584 = vst [vmem:[#allocation3 + $0x38] sm:$0xff] %v575
    // Predicated region
    $region34: #{bert_pretraining_heads.2} parent=1 // pred_check
      _
    $region35: #{bert_pretraining_heads.2} parent=1 // pred_check_branch
      %586 = sbr.rel (0) target = $region37
    $region36: #{bert_pretraining_heads.2} parent=1 // pred_region
      %588 = vsyncadd [#allocation4], 0
      %s589 = sshll.u32 [#allocation3], 4
      %s590 = int_to_ptr.vmem [resolvable:$true] %s589
      %s591 = sshll.u32 %s7, 4
      %s592 = int_to_ptr.hbm [resolvable:$true] %s591
      %597 = dma.vmem_to_hbm [thread:$0]  %s590, 1024, %s592, [#allocation4], 256, 256, 16
    $region37: #{bert_pretraining_heads.2} parent=1 // pred_fallthru
      _
    // Predicated region
    $region38: #{bert_pretraining_heads.2} parent=1 // pred_check
      _
    $region39: #{bert_pretraining_heads.2} parent=1 // pred_check_branch
      %599 = sbr.rel (0) target = $region41
    $region40: #{bert_pretraining_heads.2} parent=1 // pred_region
      %601 = dma.done [#allocation4], 1024
    $region41: #{bert_pretraining_heads.2} parent=1 // pred_fallthru
      _
    %602 = vsyncpa [#allocation4], 1

</llo_original>
